<compile_context>
chip_gen: v6e
topology: v6e:2x2x1
jax: 0.10.0
libtpu: 0.0.40
codegen_flags: <defaults>
</compile_context>

<pallas_src>
import functools

import jax
import jax.numpy as jnp
from jax.experimental import pallas as pl
from jax.experimental.pallas import tpu as pltpu

_VMEM_LIMIT = 48 * 1024 * 1024   # under v7x's 64 MiB physical VMEM
_MASK_VALUE = -1e30              # exactly representable in bf16; exp -> 0


def _pick_tile(dim, target, align):
    """Largest multiple of `align` that divides `dim` and is <= target, else full dim."""
    if dim <= target:
        return dim
    t = (target // align) * align
    while t >= align:
        if dim % t == 0:
            return t
        t -= align
    return dim


# ----------------------------------------------------------------------------
# Tiled matmul kernel (pipelined, f32 accumulator) -- used once for the fused
# node projection (fc | res_fc | el | er), padded to 128 output lanes.
# ----------------------------------------------------------------------------
def _matmul_kernel(a_ref, b_ref, o_ref, acc_ref):
    @pl.when(pl.program_id(2) == 0)
    def _():
        acc_ref[...] = jnp.zeros_like(acc_ref)

    acc_ref[...] += jnp.dot(a_ref[...], b_ref[...],
                            preferred_element_type=jnp.float32)

    @pl.when(pl.program_id(2) == pl.num_programs(2) - 1)
    def _():
        o_ref[...] = acc_ref[...].astype(o_ref.dtype)


def pallas_matmul(a, b, *, tm=256, tn=256, tk=256):
    """a: [M, K] f32, b: [K, N] f32 -> [M, N] f32."""
    M, K = a.shape
    K2, N = b.shape
    assert K == K2
    tm = _pick_tile(M, tm, 8)
    tn = _pick_tile(N, tn, 128)
    tk = _pick_tile(K, tk, 128)
    grid = (M // tm, N // tn, K // tk)
    return pl.pallas_call(
        _matmul_kernel,
        out_shape=jax.ShapeDtypeStruct((M, N), jnp.float32),
        grid_spec=pltpu.PrefetchScalarGridSpec(
            num_scalar_prefetch=0,
            grid=grid,
            in_specs=[pl.BlockSpec((tm, tk), lambda i, j, k: (i, k)),
                      pl.BlockSpec((tk, tn), lambda i, j, k: (k, j))],
            out_specs=pl.BlockSpec((tm, tn), lambda i, j, k: (i, j)),
            scratch_shapes=[pltpu.VMEM((tm, tn), jnp.float32)]),
        compiler_params=pltpu.CompilerParams(
            dimension_semantics=("parallel", "parallel", "arbitrary"),
            vmem_limit_bytes=_VMEM_LIMIT),
    )(a, b)


# ----------------------------------------------------------------------------
# Attention kernel: block-sparse, head-fused masked edge-softmax (flash-style
# online softmax) + MXU aggregation + fused residual/bias/ELU epilogue.
# ----------------------------------------------------------------------------
def _gat_attn_kernel(tbl_ref, cnt_ref,              # scalar prefetch (SMEM)
                     ee_ref, feat_ref, res_ref,     # inputs
                     rst_ref, lse_ref,              # outputs
                     m_sc, l_sc, acc_sc,            # scratch
                     *, num_heads):
    i = pl.program_id(0)
    j = pl.program_id(1)
    H = num_heads
    D = feat_ref.shape[-1]

    @pl.when(j == 0)
    def _():
        m_sc[...] = jnp.full_like(m_sc, -jnp.inf)
        l_sc[...] = jnp.zeros_like(l_sc)
        acc_sc[...] = jnp.zeros_like(acc_sc)

    # Skip padded schedule slots (src tiles beyond this dst tile's nnz count).
    @pl.when(j < cnt_ref[i])
    def _():
        for h in range(H):                      # static unroll over fused heads
            # mask + el + er + leaky_relu are pre-folded; bf16 -> f32 upcast.
            logits = ee_ref[h].astype(jnp.float32)               # [td, ts]
            m_prev = m_sc[h]                                     # [td, 1]
            m_new = jnp.maximum(m_prev,
                                jnp.max(logits, axis=-1, keepdims=True))
            alpha = jnp.exp(m_prev - m_new)
            p = jnp.exp(logits - m_new)                          # [td, ts]
            l_sc[h] = alpha * l_sc[h] + jnp.sum(p, axis=-1, keepdims=True)
            # aggregation on the MXU: bf16 operands, f32 accumulation
            acc_sc[h] = alpha * acc_sc[h] + jnp.dot(
                p.astype(feat_ref.dtype), feat_ref[h],
                preferred_element_type=jnp.float32)
            m_sc[h] = m_new

    @pl.when(j == pl.num_programs(1) - 1)
    def _():
        for h in range(H):
            l = l_sc[h]                                          # [td, 1]
            # exact reciprocal off the hot loop; guard l == 0 (no edges at all)
            inv = jnp.where(l > 0.0, pl.reciprocal(l, approx=False), 0.0)
            val = acc_sc[h] * inv + res_ref[:, h * D:(h + 1) * D]
            # fused ELU (residual + bias already inside res_ref)
            rst_ref[:, h * D:(h + 1) * D] = jnp.where(
                val > 0.0, val, jnp.exp(val) - 1.0)
            lse_ref[h] = m_sc[h] + jnp.log(l)


def gat_attention(ee_dense, feat_hnd, res_bias, src, dst, *,
                  dst_tile=256, src_tile=1024):
    """ee_dense: [H,N,N] (mask/logits prefolded), feat_hnd: [H,N,D] bf16,
    res_bias: [N,H*D] f32 (res_fc(feat)+bias).  Returns ([N,H*D], [H,N,1])."""
    H, N, _ = ee_dense.shape
    D = feat_hnd.shape[-1]
    HD = H * D
    td = _pick_tile(N, dst_tile, 8)
    ts = _pick_tile(N, src_tile, 128)
    nd, ns = N // td, N // ts

    # Block-sparse schedule (scalar prefetch): per dst tile, the ascending list
    # of src tiles containing >=1 edge, padded by repeating the last valid
    # entry (same block index => the pipeline does not re-DMA padded slots).
    # NOTE: needs concrete edge lists (eager) to size the grid.
    nnz = jnp.zeros((nd, ns), dtype=bool).at[dst // td, src // ts].set(True)
    counts = jnp.sum(nnz, axis=1).astype(jnp.int32)              # [nd]
    max_cnt = max(int(jnp.max(counts)), 1)
    col = jnp.arange(ns, dtype=jnp.int32)
    idx = jnp.where(nnz, col[None, :], jnp.int32(ns))            # empty -> sentinel
    sorted_idx = jnp.sort(idx, axis=1)[:, :max_cnt]              # [nd, max_cnt]
    last_valid = jnp.take_along_axis(
        sorted_idx, jnp.maximum(counts - 1, 0)[:, None], axis=1)
    last_valid = jnp.where(counts[:, None] > 0, last_valid, 0)
    tbl = jnp.where(sorted_idx >= ns, last_valid, sorted_idx).astype(jnp.int32)

    kernel = functools.partial(_gat_attn_kernel, num_heads=H)
    return pl.pallas_call(
        kernel,
        out_shape=(jax.ShapeDtypeStruct((N, HD), jnp.float32),   # rst (lane-dense)
                   jax.ShapeDtypeStruct((H, N, 1), jnp.float32)),  # lse
        grid_spec=pltpu.PrefetchScalarGridSpec(
            num_scalar_prefetch=2,
            grid=(nd, max_cnt),
            in_specs=[
                # dense prefolded logits (bf16): data-dependent src-tile index
                pl.BlockSpec((H, td, ts), lambda i, j, tb, ct: (0, i, tb[i, j])),
                # projected source features (bf16), all heads per step
                pl.BlockSpec((H, ts, D), lambda i, j, tb, ct: (0, tb[i, j], 0)),
                # residual + bias, resident across the src-tile loop
                pl.BlockSpec((td, HD), lambda i, j, tb, ct: (i, 0)),
            ],
            out_specs=(pl.BlockSpec((td, HD), lambda i, j, tb, ct: (i, 0)),
                       pl.BlockSpec((H, td, 1), lambda i, j, tb, ct: (0, i, 0))),
            scratch_shapes=[pltpu.VMEM((H, td, 1), jnp.float32),   # running max
                            pltpu.VMEM((H, td, 1), jnp.float32),   # running denom
                            pltpu.VMEM((H, td, D), jnp.float32)]), # running acc
        compiler_params=pltpu.CompilerParams(
            dimension_semantics=("parallel", "arbitrary"),
            vmem_limit_bytes=_VMEM_LIMIT),
    )(tbl, counts, ee_dense, feat_hnd, res_bias)


# ----------------------------------------------------------------------------
# myGATConv forward (Pallas kernels + JAX glue)
# ----------------------------------------------------------------------------
def my_gat_conv_forward(params, feat, src, dst, etype, *, num_heads, out_feats,
                        edge_feats, negative_slope,
                        attn_dst_tile=256, attn_src_tile=1024,
                        logit_dtype=jnp.bfloat16):
    N, f_in = feat.shape
    H, D, ef = num_heads, out_feats, edge_feats
    HD = H * D

    # --- fused node projection: fc | res_fc | el | er in ONE padded GEMM ----
    fc_w_r = params["fc_w"].reshape(H, D, f_in)
    w_el = jnp.einsum("hd,hdf->hf", params["attn_l"][0], fc_w_r)   # [H, f_in]
    w_er = jnp.einsum("hd,hdf->hf", params["attn_r"][0], fc_w_r)   # [H, f_in]
    w_cat = jnp.concatenate(
        [params["fc_w"], params["res_fc_w"], w_el, w_er], axis=0)  # [2HD+2H, f_in]
    pad = (-w_cat.shape[0]) % 128                                  # lane-dense output
    w_cat = jnp.pad(w_cat, ((0, pad), (0, 0)))
    proj = pallas_matmul(feat, w_cat.T)                            # [N, padded]

    feat_proj = proj[:, :HD].reshape(N, H, D)
    res_bias = proj[:, HD:2 * HD] + params["bias_param"].reshape(1, HD)  # [N, HD]
    el = proj[:, 2 * HD:2 * HD + H]                                # [N, H]
    er = proj[:, 2 * HD + H:2 * HD + 2 * H]                        # [N, H]

    # --- edge-type attention term: fold fc_e + attn_e into a tiny table -----
    w_ee = jnp.einsum("hk,hkf->hf", params["attn_e"][0],
                      params["fc_e_w"].reshape(H, ef, ef))         # [H, ef]
    ee_edge = (params["edge_emb"] @ w_ee.T)[etype]                 # [E, H]

    # --- per-edge logits (leaky_relu prefolded); also reused for attn out ---
    logit_e = el[src] + er[dst] + ee_edge
    logit_e = jnp.where(logit_e >= 0, logit_e, negative_slope * logit_e)

    # TODO(synk): the edge-list -> dense-block scatter (DGL graph indexing) has
    # no clean Pallas TPU equivalent and stays in XLA glue.  A CSR layout that
    # is densified per (dst,src) block inside the kernel would remove the
    # O(H*N^2) footprint entirely.  Assumes no duplicate (src, dst) edges
    # (last-writer-wins in the scatter; asserted in __main__).
    ee_dense = jnp.full((H, N, N), _MASK_VALUE, dtype=logit_dtype)
    ee_dense = ee_dense.at[:, dst, src].set(logit_e.T.astype(logit_dtype))

    feat_hnd = jnp.transpose(feat_proj, (1, 0, 2)).astype(jnp.bfloat16)  # [H,N,D]

    rst_flat, lse = gat_attention(
        ee_dense, feat_hnd, res_bias.astype(jnp.float32), src, dst,
        dst_tile=attn_dst_tile, src_tile=attn_src_tile)

    # kernel output already contains residual + bias + ELU (fused epilogue)
    rst = rst_flat.reshape(N, H, D)

    # per-edge attention from the per-dst log-sum-exp; the dense [H,N,N]
    # attention map is never written to HBM.
    attn = jnp.exp(logit_e - lse[:, dst, 0].T)[:, :, None]         # [E, H, 1]
    return rst, attn


# ----------------------------------------------------------------------------
# Pure-JAX reference (mirrors the PyTorch forward, eval mode)
# ----------------------------------------------------------------------------
def reference_forward(params, feat, src, dst, etype, *, num_heads, out_feats,
                      edge_feats, negative_slope):
    N = feat.shape[0]
    H, D, ef = num_heads, out_feats, edge_feats
    feat_proj = (feat @ params["fc_w"].T).reshape(N, H, D)
    e_emb = params["edge_emb"][etype]
    e_proj = (e_emb @ params["fc_e_w"].T).reshape(-1, H, ef)
    ee = jnp.sum(e_proj * params["attn_e"], axis=-1)               # [E, H]
    el = jnp.sum(feat_proj * params["attn_l"], axis=-1)            # [N, H]
    er = jnp.sum(feat_proj * params["attn_r"], axis=-1)            # [N, H]
    logit = el[src] + er[dst] + ee
    logit = jnp.where(logit >= 0, logit, negative_slope * logit)
    m = jnp.full((N, H), -jnp.inf).at[dst].max(logit)
    p = jnp.exp(logit - m[dst])
    denom = jnp.zeros((N, H)).at[dst].add(p)
    a = p / denom[dst]
    rst = jnp.zeros((N, H, D)).at[dst].add(a[:, :, None] * feat_proj[src])
    resval = (feat @ params["res_fc_w"].T).reshape(N, H, D)
    rst = rst + resval + params["bias_param"]
    rst = jax.nn.elu(rst)
    return rst, a[:, :, None]


# ----------------------------------------------------------------------------
# Deterministic parameter init (xavier_normal, gain=sqrt(2) as in reset_parameters)
# ----------------------------------------------------------------------------
def xavier_normal(key, shape, fan_in, fan_out, gain):
    std = gain * (2.0 / (fan_in + fan_out)) ** 0.5
    return std * jax.random.normal(key, shape, dtype=jnp.float32)


if __name__ == "__main__":
    N = 256           # nodes
    IN_FEATS = 32
    OUT_FEATS = 8     # D
    NUM_HEADS = 4     # H
    EDGE_FEATS = 8
    NUM_ETYPES = 3
    NEG_SLOPE = 0.2
    GAIN = 2.0 ** 0.5

    key = jax.random.PRNGKey(0)
    keys = jax.random.split(key, 8)

    params = {
        "fc_w": xavier_normal(keys[0], (NUM_HEADS * OUT_FEATS, IN_FEATS),
                              IN_FEATS, NUM_HEADS * OUT_FEATS, GAIN),
        "fc_e_w": xavier_normal(keys[1], (NUM_HEADS * EDGE_FEATS, EDGE_FEATS),
                                EDGE_FEATS, NUM_HEADS * EDGE_FEATS, GAIN),
        "res_fc_w": xavier_normal(keys[2], (NUM_HEADS * OUT_FEATS, IN_FEATS),
                                  IN_FEATS, NUM_HEADS * OUT_FEATS, GAIN),
        "attn_l": xavier_normal(keys[3], (1, NUM_HEADS, OUT_FEATS),
                                OUT_FEATS, NUM_HEADS, GAIN),
        "attn_r": xavier_normal(keys[4], (1, NUM_HEADS, OUT_FEATS),
                                OUT_FEATS, NUM_HEADS, GAIN),
        "attn_e": xavier_normal(keys[5], (1, NUM_HEADS, EDGE_FEATS),
                                EDGE_FEATS, NUM_HEADS, GAIN),
        "edge_emb": xavier_normal(keys[6], (NUM_ETYPES, EDGE_FEATS),
                                  EDGE_FEATS, NUM_ETYPES, GAIN),
        "bias_param": jnp.zeros((1, NUM_HEADS, OUT_FEATS), jnp.float32),
    }

    feat = jax.random.normal(keys[7], (N, IN_FEATS), dtype=jnp.float32)

    # Deterministic graph: self-loop on every node (no zero-in-degree) plus a
    # cross-half edge (n + N/2 -> n) into the first half only.  With 128-wide
    # tiles, dst tile 0 sees 2 non-empty src tiles and dst tile 1 sees 1, so
    # the run exercises the multi-step online softmax, the block-sparse skip
    # and the padded-slot path of the scalar-prefetched schedule.
    nodes = jnp.arange(N, dtype=jnp.int32)
    half = N // 2
    src = jnp.concatenate([nodes, nodes[:half] + half])
    dst = jnp.concatenate([nodes, nodes[:half]])
    etype = jnp.arange(src.shape[0], dtype=jnp.int32) % NUM_ETYPES

    # the dense scatter assumes no duplicate (src, dst) edges
    edge_key = src * jnp.int32(N) + dst
    assert int(jnp.unique(edge_key).size) == int(edge_key.size), "duplicate edges"

    rst, attn = my_gat_conv_forward(
        params, feat, src, dst, etype,
        num_heads=NUM_HEADS, out_feats=OUT_FEATS, edge_feats=EDGE_FEATS,
        negative_slope=NEG_SLOPE,
        attn_dst_tile=128, attn_src_tile=128)   # force 2x2 tiling at N=256
    rst, attn = jax.block_until_ready((rst, attn))

    rst_ref, attn_ref = reference_forward(
        params, feat, src, dst, etype,
        num_heads=NUM_HEADS, out_feats=OUT_FEATS, edge_feats=EDGE_FEATS,
        negative_slope=NEG_SLOPE)

    assert rst.shape == (N, NUM_HEADS, OUT_FEATS)
    assert attn.shape == (src.shape[0], NUM_HEADS, 1)
    rst_err = float(jnp.max(jnp.abs(rst - rst_ref)))
    attn_err = float(jnp.max(jnp.abs(attn - attn_ref)))
    # bf16 dense logits + bf16 MXU aggregation -> bf16-level tolerances
    # (use logit_dtype=jnp.float32 for tighter accuracy at 2x the HBM traffic).
    assert jnp.allclose(rst, rst_ref, rtol=5e-2, atol=1e-1), f"rst max err {rst_err}"
    assert jnp.allclose(attn, attn_ref, rtol=5e-2, atol=1e-3), f"attn max err {attn_err}"
    print("KERNEL_OK")
</pallas_src>

<mosaic_0001>
module attributes {stable_mosaic.version = 11 : i64} {
  func.func @_matmul_kernel(%arg0: i32, %arg1: i32, %arg2: i32, %arg3: memref<256x32xf32, #tpu.memory_space<vmem>>, %arg4: memref<32x128xf32, #tpu.memory_space<vmem>>, %arg5: memref<256x128xf32, #tpu.memory_space<vmem>>, %arg6: memref<256x128xf32, #tpu.memory_space<vmem>>) attributes {dimension_semantics = [#tpu.dimension_semantics<parallel>, #tpu.dimension_semantics<parallel>, #tpu.dimension_semantics<arbitrary>], iteration_bounds = array<i64: 1, 1, 1>, scalar_prefetch = 0 : i64, scratch_operands = 1 : i64, tpu.core_type = #tpu.core_type<tc>, window_params = [{transform_indices = @transform_0, window_bounds = array<i64: 256, 32>}, {transform_indices = @transform_1, window_bounds = array<i64: 32, 128>}, {transform_indices = @transform_2, window_bounds = array<i64: 256, 128>}]} {
    %c0_i32 = arith.constant 0 : i32
    %0 = arith.cmpi eq, %arg2, %c0_i32 : i32
    %1 = arith.extui %0 : i1 to i32
    %c0_i32_0 = arith.constant 0 : i32
    %2 = arith.cmpi ne, %1, %c0_i32_0 : i32
    scf.if %2 {
      %cst_10 = arith.constant 0.000000e+00 : f32
      %12 = vector.broadcast %cst_10 : f32 to vector<256x128xf32>
      %c0_11 = arith.constant 0 : index
      %c0_12 = arith.constant 0 : index
      %13 = vector.load %arg6[%c0_11, %c0_12] : memref<256x128xf32, #tpu.memory_space<vmem>>, vector<256x128xf32>
      tpu.vector_store %arg6[%c0_11, %c0_12], %12 {strides = array<i32>} : memref<256x128xf32, #tpu.memory_space<vmem>>, vector<256x128xf32>,
    } else {
    }
    %c0 = arith.constant 0 : index
    %c0_1 = arith.constant 0 : index
    %3 = vector.load %arg6[%c0, %c0_1] : memref<256x128xf32, #tpu.memory_space<vmem>>, vector<256x128xf32>
    %c0_2 = arith.constant 0 : index
    %c0_3 = arith.constant 0 : index
    %4 = vector.load %arg3[%c0_2, %c0_3] : memref<256x32xf32, #tpu.memory_space<vmem>>, vector<256x32xf32>
    %c0_4 = arith.constant 0 : index
    %c0_5 = arith.constant 0 : index
    %5 = vector.load %arg4[%c0_4, %c0_5] : memref<32x128xf32, #tpu.memory_space<vmem>>, vector<32x128xf32>
    %cst = arith.constant dense<0.000000e+00> : vector<256x128xf32>
    %6 = tpu.matmul %4, %5, %cst {dimension_numbers = #tpu.dot_dimension_numbers<[1], [0], [0], [1], [0, 0, 1, 1], [], []>} : vector<256x32xf32>, vector<32x128xf32>, vector<256x128xf32> -> vector<256x128xf32>
    %7 = arith.addf %3, %6 : vector<256x128xf32>
    %c0_6 = arith.constant 0 : index
    %c0_7 = arith.constant 0 : index
    %8 = vector.load %arg6[%c0_6, %c0_7] : memref<256x128xf32, #tpu.memory_space<vmem>>, vector<256x128xf32>
    tpu.vector_store %arg6[%c0_6, %c0_7], %7 {strides = array<i32>} : memref<256x128xf32, #tpu.memory_space<vmem>>, vector<256x128xf32>,
    %c0_i32_8 = arith.constant 0 : i32
    %9 = arith.cmpi eq, %arg2, %c0_i32_8 : i32
    %10 = arith.extui %9 : i1 to i32
    %c0_i32_9 = arith.constant 0 : i32
    %11 = arith.cmpi ne, %10, %c0_i32_9 : i32
    scf.if %11 {
      %c0_10 = arith.constant 0 : index
      %c0_11 = arith.constant 0 : index
      %12 = vector.load %arg6[%c0_10, %c0_11] : memref<256x128xf32, #tpu.memory_space<vmem>>, vector<256x128xf32>
      %c0_12 = arith.constant 0 : index
      %c0_13 = arith.constant 0 : index
      %13 = vector.load %arg5[%c0_12, %c0_13] : memref<256x128xf32, #tpu.memory_space<vmem>>, vector<256x128xf32>
      tpu.vector_store %arg5[%c0_12, %c0_13], %12 {strides = array<i32>} : memref<256x128xf32, #tpu.memory_space<vmem>>, vector<256x128xf32>,
    } else {
    }
    return
  }
  func.func @transform_0(%arg0: i32, %arg1: i32, %arg2: i32) -> (i32, i32) {
    %c0_i32 = arith.constant 0 : i32
    return %arg0, %arg2 : i32, i32
  }
  func.func @transform_1(%arg0: i32, %arg1: i32, %arg2: i32) -> (i32, i32) {
    %c0_i32 = arith.constant 0 : i32
    return %arg2, %arg1 : i32, i32
  }
  func.func @transform_2(%arg0: i32, %arg1: i32, %arg2: i32) -> (i32, i32) {
    %c0_i32 = arith.constant 0 : i32
    return %arg0, %arg1 : i32, i32
  }
}

</mosaic_0001>

<llo_original>
// kernel: tpu_custom_call.1
$region0: #{tpu_custom_call.1}
  #allocation0 [shape = 'u32[]', space=smem, size = 0x4, offset = 0x4, fixed_abs, tag = 'smem constant byte address 0x4 - core index']
  #allocation1 [shape = 'u32[144,128]{1,0:T(1,128)}', space=vmem, size = 0x12000, scoped, tag = 'internal scratch']
  #allocation2 [shape = 'f32[256,128]{1,0:T(8,128)}', space=vmem, size = 0x20000, scoped, tag = 'scratch operand']
  %s0 = inlined_call_operand.vmem [shape: f32[256,32], index: 0, kind: input, shape index: {}]
  %s1 = inlined_call_operand.vmem [shape: f32[32,128], index: 1, kind: input, shape index: {}]
  %s2 = inlined_call_operand.hbm [shape: f32[256,128], index: 2, kind: output, shape index: {}]
  %s3 = sld [smem:[#allocation0]]
  $region26: #{tpu_custom_call.1} parent=0
    _
  %s5 = ssub.s32 1, %s3
  %s6 = scalar_select 0, %s5, %s3
  $region1: #{tpu_custom_call.1} parent=0
    #allocation3 [shape = 'u8[131072]{0}', space=vmem, size = 0x20000, scoped, tag = 'output window, operand 0, single buffered']
    #allocation4 [shape = 's32[1]{0}', space=sflag, size = 0x4, scoped, tag = 'scoped memory for tpu_custom_call.1']
    %7 = vsyncpa [#allocation4], 0
    // Predicated region
    $region2: #{tpu_custom_call.1} parent=1 // pred_check
      _
    $region3: #{tpu_custom_call.1} parent=1 // pred_check_branch
      %9 = sbr.rel (0) target = $region5
    $region4: #{tpu_custom_call.1} parent=1 // pred_region
      _
    $region5: #{tpu_custom_call.1} parent=1 // pred_fallthru
      _
    // Predicated region
    $region6: #{tpu_custom_call.1} parent=1 // pred_check
      _
    $region7: #{tpu_custom_call.1} parent=1 // pred_check_branch
      %11 = sbr.rel (0) target = $region9
    $region8: #{tpu_custom_call.1} parent=1 // pred_region
      _
    $region9: #{tpu_custom_call.1} parent=1 // pred_fallthru
      _
    %p12 = scmp.eq.s32.totalorder 0, 0
    // Predicated region
    $region10: #{tpu_custom_call.1} parent=1 // pred_check
      %p13 = pneg %p12
    $region11: #{tpu_custom_call.1} parent=1 // pred_check_branch
      %15 = sbr.rel (%p13) target = $region13
    $region12: #{tpu_custom_call.1} parent=1 // pred_region
      %16 = vst [vmem:[#allocation2] sm:$0xff] 0.0
      %17 = vst [vmem:[#allocation2 + $0x8] sm:$0xff] 0.0
      %18 = vst [vmem:[#allocation2 + $0x10] sm:$0xff] 0.0
      %19 = vst [vmem:[#allocation2 + $0x18] sm:$0xff] 0.0
      %20 = vst [vmem:[#allocation2 + $0x20] sm:$0xff] 0.0
      %21 = vst [vmem:[#allocation2 + $0x28] sm:$0xff] 0.0
      %22 = vst [vmem:[#allocation2 + $0x30] sm:$0xff] 0.0
      %23 = vst [vmem:[#allocation2 + $0x38] sm:$0xff] 0.0
      %24 = vst [vmem:[#allocation2 + $0x40] sm:$0xff] 0.0
      %25 = vst [vmem:[#allocation2 + $0x48] sm:$0xff] 0.0
      %26 = vst [vmem:[#allocation2 + $0x50] sm:$0xff] 0.0
      %27 = vst [vmem:[#allocation2 + $0x58] sm:$0xff] 0.0
      %28 = vst [vmem:[#allocation2 + $0x60] sm:$0xff] 0.0
      %29 = vst [vmem:[#allocation2 + $0x68] sm:$0xff] 0.0
      %30 = vst [vmem:[#allocation2 + $0x70] sm:$0xff] 0.0
      %31 = vst [vmem:[#allocation2 + $0x78] sm:$0xff] 0.0
      %32 = vst [vmem:[#allocation2 + $0x80] sm:$0xff] 0.0
      %33 = vst [vmem:[#allocation2 + $0x88] sm:$0xff] 0.0
      %34 = vst [vmem:[#allocation2 + $0x90] sm:$0xff] 0.0
      %35 = vst [vmem:[#allocation2 + $0x98] sm:$0xff] 0.0
      %36 = vst [vmem:[#allocation2 + $0xa0] sm:$0xff] 0.0
      %37 = vst [vmem:[#allocation2 + $0xa8] sm:$0xff] 0.0
      %38 = vst [vmem:[#allocation2 + $0xb0] sm:$0xff] 0.0
      %39 = vst [vmem:[#allocation2 + $0xb8] sm:$0xff] 0.0
      %40 = vst [vmem:[#allocation2 + $0xc0] sm:$0xff] 0.0
      %41 = vst [vmem:[#allocation2 + $0xc8] sm:$0xff] 0.0
      %42 = vst [vmem:[#allocation2 + $0xd0] sm:$0xff] 0.0
      %43 = vst [vmem:[#allocation2 + $0xd8] sm:$0xff] 0.0
      %44 = vst [vmem:[#allocation2 + $0xe0] sm:$0xff] 0.0
      %45 = vst [vmem:[#allocation2 + $0xe8] sm:$0xff] 0.0
      %46 = vst [vmem:[#allocation2 + $0xf0] sm:$0xff] 0.0
      %47 = vst [vmem:[#allocation2 + $0xf8] sm:$0xff] 0.0
    $region13: #{tpu_custom_call.1} parent=1 // pred_fallthru
      _
    %v48 = vld [vmem:[#allocation2] sm:$0xff]
    %v49 = vld [vmem:[#allocation2 + $0x8] sm:$0xff]
    %v50 = vld [vmem:[#allocation2 + $0x10] sm:$0xff]
    %v51 = vld [vmem:[#allocation2 + $0x18] sm:$0xff]
    %v52 = vld [vmem:[#allocation2 + $0x20] sm:$0xff]
    %v53 = vld [vmem:[#allocation2 + $0x28] sm:$0xff]
    %v54 = vld [vmem:[#allocation2 + $0x30] sm:$0xff]
    %v55 = vld [vmem:[#allocation2 + $0x38] sm:$0xff]
    %v56 = vld [vmem:[#allocation2 + $0x40] sm:$0xff]
    %v57 = vld [vmem:[#allocation2 + $0x48] sm:$0xff]
    %v58 = vld [vmem:[#allocation2 + $0x50] sm:$0xff]
    %v59 = vld [vmem:[#allocation2 + $0x58] sm:$0xff]
    %v60 = vld [vmem:[#allocation2 + $0x60] sm:$0xff]
    %v61 = vld [vmem:[#allocation2 + $0x68] sm:$0xff]
    %v62 = vld [vmem:[#allocation2 + $0x70] sm:$0xff]
    %v63 = vld [vmem:[#allocation2 + $0x78] sm:$0xff]
    %v64 = vld [vmem:[#allocation2 + $0x80] sm:$0xff]
    %v65 = vld [vmem:[#allocation2 + $0x88] sm:$0xff]
    %v66 = vld [vmem:[#allocation2 + $0x90] sm:$0xff]
    %v67 = vld [vmem:[#allocation2 + $0x98] sm:$0xff]
    %v68 = vld [vmem:[#allocation2 + $0xa0] sm:$0xff]
    %v69 = vld [vmem:[#allocation2 + $0xa8] sm:$0xff]
    %v70 = vld [vmem:[#allocation2 + $0xb0] sm:$0xff]
    %v71 = vld [vmem:[#allocation2 + $0xb8] sm:$0xff]
    %v72 = vld [vmem:[#allocation2 + $0xc0] sm:$0xff]
    %v73 = vld [vmem:[#allocation2 + $0xc8] sm:$0xff]
    %v74 = vld [vmem:[#allocation2 + $0xd0] sm:$0xff]
    %v75 = vld [vmem:[#allocation2 + $0xd8] sm:$0xff]
    %v76 = vld [vmem:[#allocation2 + $0xe0] sm:$0xff]
    %v77 = vld [vmem:[#allocation2 + $0xe8] sm:$0xff]
    %v78 = vld [vmem:[#allocation2 + $0xf0] sm:$0xff]
    %v79 = vld [vmem:[#allocation2 + $0xf8] sm:$0xff]
    %v80 = vld [vmem:[%s0] sm:$0xff]
    %v81 = vld [vmem:[%s0 + $0x8] sm:$0xff]
    %v82 = vld [vmem:[%s0 + $0x10] sm:$0xff]
    %v83 = vld [vmem:[%s0 + $0x18] sm:$0xff]
    %v84 = vld [vmem:[%s0 + $0x20] sm:$0xff]
    %v85 = vld [vmem:[%s0 + $0x28] sm:$0xff]
    %v86 = vld [vmem:[%s0 + $0x30] sm:$0xff]
    %v87 = vld [vmem:[%s0 + $0x38] sm:$0xff]
    %v88 = vld [vmem:[%s0 + $0x40] sm:$0xff]
    %v89 = vld [vmem:[%s0 + $0x48] sm:$0xff]
    %v90 = vld [vmem:[%s0 + $0x50] sm:$0xff]
    %v91 = vld [vmem:[%s0 + $0x58] sm:$0xff]
    %v92 = vld [vmem:[%s0 + $0x60] sm:$0xff]
    %v93 = vld [vmem:[%s0 + $0x68] sm:$0xff]
    %v94 = vld [vmem:[%s0 + $0x70] sm:$0xff]
    %v95 = vld [vmem:[%s0 + $0x78] sm:$0xff]
    %v96 = vld [vmem:[%s0 + $0x80] sm:$0xff]
    %v97 = vld [vmem:[%s0 + $0x88] sm:$0xff]
    %v98 = vld [vmem:[%s0 + $0x90] sm:$0xff]
    %v99 = vld [vmem:[%s0 + $0x98] sm:$0xff]
    %v100 = vld [vmem:[%s0 + $0xa0] sm:$0xff]
    %v101 = vld [vmem:[%s0 + $0xa8] sm:$0xff]
    %v102 = vld [vmem:[%s0 + $0xb0] sm:$0xff]
    %v103 = vld [vmem:[%s0 + $0xb8] sm:$0xff]
    %v104 = vld [vmem:[%s0 + $0xc0] sm:$0xff]
    %v105 = vld [vmem:[%s0 + $0xc8] sm:$0xff]
    %v106 = vld [vmem:[%s0 + $0xd0] sm:$0xff]
    %v107 = vld [vmem:[%s0 + $0xd8] sm:$0xff]
    %v108 = vld [vmem:[%s0 + $0xe0] sm:$0xff]
    %v109 = vld [vmem:[%s0 + $0xe8] sm:$0xff]
    %v110 = vld [vmem:[%s0 + $0xf0] sm:$0xff]
    %v111 = vld [vmem:[%s0 + $0xf8] sm:$0xff]
    %v112 = vld [vmem:[%s1] sm:$0xff]
    %v113 = vld [vmem:[%s1 + $0x8] sm:$0xff]
    %v114 = vld [vmem:[%s1 + $0x10] sm:$0xff]
    %v115 = vld [vmem:[%s1 + $0x18] sm:$0xff]
    %vm116 = vcmask 261120
    %v118 = vsel %vm116, %v80, 0
    %v121 = vsel %vm116, %v81, 0
    %v124 = vsel %vm116, %v82, 0
    %v127 = vsel %vm116, %v83, 0
    %v130 = vsel %vm116, %v84, 0
    %v133 = vsel %vm116, %v85, 0
    %v136 = vsel %vm116, %v86, 0
    %v139 = vsel %vm116, %v87, 0
    %v142 = vsel %vm116, %v88, 0
    %v145 = vsel %vm116, %v89, 0
    %v148 = vsel %vm116, %v90, 0
    %v151 = vsel %vm116, %v91, 0
    %v154 = vsel %vm116, %v92, 0
    %v157 = vsel %vm116, %v93, 0
    %v160 = vsel %vm116, %v94, 0
    %v163 = vsel %vm116, %v95, 0
    %v166 = vsel %vm116, %v96, 0
    %v169 = vsel %vm116, %v97, 0
    %v172 = vsel %vm116, %v98, 0
    %v175 = vsel %vm116, %v99, 0
    %v178 = vsel %vm116, %v100, 0
    %v181 = vsel %vm116, %v101, 0
    %v184 = vsel %vm116, %v102, 0
    %v187 = vsel %vm116, %v103, 0
    %v190 = vsel %vm116, %v104, 0
    %v193 = vsel %vm116, %v105, 0
    %v196 = vsel %vm116, %v106, 0
    %v199 = vsel %vm116, %v107, 0
    %v202 = vsel %vm116, %v108, 0
    %v205 = vsel %vm116, %v109, 0
    %v208 = vsel %vm116, %v110, 0
    %v211 = vsel %vm116, %v111, 0
    %213 = vmatprep.subr.mxu0 0.0
    %214 = vmatpush1.msra.mxu0 0.0
    %215 = vmatprep.subr.mxu0 0.0
    %216 = vmatpush1.msra.mxu0 0.0
    %217 = vmatprep.subr.mxu0 0.0
    %218 = vmatpush1.msra.mxu0 0.0
    %219 = vmatprep.subr.mxu0 0.0
    %220 = vmatpush1.msra.mxu0 0.0
    %221 = vmatprep.subr.mxu0 0.0
    %222 = vmatpush1.msra.mxu0 0.0
    %223 = vmatprep.subr.mxu0 0.0
    %224 = vmatpush1.msra.mxu0 0.0
    %225 = vmatprep.subr.mxu0 0.0
    %226 = vmatpush1.msra.mxu0 0.0
    %227 = vmatprep.subr.mxu0 0.0
    %228 = vmatpush1.msra.mxu0 0.0
    %229 = vmatprep.subr.mxu0 0.0
    %230 = vmatpush1.msra.mxu0 0.0
    %231 = vmatprep.subr.mxu0 0.0
    %232 = vmatpush1.msra.mxu0 0.0
    %233 = vmatprep.subr.mxu0 0.0
    %234 = vmatpush1.msra.mxu0 0.0
    %235 = vmatprep.subr.mxu0 0.0
    %236 = vmatpush1.msra.mxu0 0.0
    %237 = vmatprep.subr.mxu0 0.0
    %238 = vmatpush1.msra.mxu0 %v115
    %239 = vmatprep.subr.mxu0 0.0
    %240 = vmatpush1.msra.mxu0 %v114
    %241 = vmatprep.subr.mxu0 0.0
    %242 = vmatpush1.msra.mxu0 %v113
    %243 = vmatprep.subr.mxu0 0.0
    %244 = vmatpush1.msra.mxu0 %v112
    %245 = vmatprep.subr.mxu0 0.0
    %246 = vmatpush2.msra.mxu0 0.0
    %247 = vmatprep.subr.mxu0 0.0
    %248 = vmatpush2.msra.mxu0 0.0
    %249 = vmatprep.subr.mxu0 0.0
    %250 = vmatpush2.msra.mxu0 0.0
    %251 = vmatprep.subr.mxu0 0.0
    %252 = vmatpush2.msra.mxu0 0.0
    %253 = vmatprep.subr.mxu0 0.0
    %254 = vmatpush2.msra.mxu0 0.0
    %255 = vmatprep.subr.mxu0 0.0
    %256 = vmatpush2.msra.mxu0 0.0
    %257 = vmatprep.subr.mxu0 0.0
    %258 = vmatpush2.msra.mxu0 0.0
    %259 = vmatprep.subr.mxu0 0.0
    %260 = vmatpush2.msra.mxu0 0.0
    %261 = vmatprep.subr.mxu0 0.0
    %262 = vmatpush2.msra.mxu0 0.0
    %263 = vmatprep.subr.mxu0 0.0
    %264 = vmatpush2.msra.mxu0 0.0
    %265 = vmatprep.subr.mxu0 0.0
    %266 = vmatpush2.msra.mxu0 0.0
    %267 = vmatprep.subr.mxu0 0.0
    %268 = vmatpush2.msra.mxu0 0.0
    %269 = vmatprep.subr.mxu0 0.0
    %270 = vmatpush2.msra.mxu0 0.0
    %271 = vmatprep.subr.mxu0 0.0
    %272 = vmatpush2.msra.mxu0 0.0
    %273 = vmatprep.subr.mxu0 0.0
    %274 = vmatpush2.msra.mxu0 0.0
    %275 = vmatprep.subr.mxu0 0.0
    %276 = vmatpush2.msra.mxu0 0.0
    %277 = vmatprep.mubr.f32.mxu0 0.0
    %278 = vmatmul.mubr.f32.gmra.mxu0 %v118
    %v279 = vpop.f32.mrf.mxu0
    %v280 = vadd.f32 0.0, %v279
    %v281 = vpop.f32.mrf.mxu0
    %282 = vmatprep.mubr.f32.mxu0 0.0
    %283 = vmatmul.mubr.f32.gmra.mxu0 %v121
    %v284 = vpop.f32.mrf.mxu0
    %v285 = vadd.f32 0.0, %v284
    %v286 = vpop.f32.mrf.mxu0
    %287 = vmatprep.mubr.f32.mxu0 0.0
    %288 = vmatmul.mubr.f32.gmra.mxu0 %v124
    %v289 = vpop.f32.mrf.mxu0
    %v290 = vadd.f32 0.0, %v289
    %v291 = vpop.f32.mrf.mxu0
    %292 = vmatprep.mubr.f32.mxu0 0.0
    %293 = vmatmul.mubr.f32.gmra.mxu0 %v127
    %v294 = vpop.f32.mrf.mxu0
    %v295 = vadd.f32 0.0, %v294
    %v296 = vpop.f32.mrf.mxu0
    %297 = vmatprep.mubr.f32.mxu0 0.0
    %298 = vmatmul.mubr.f32.gmra.mxu0 %v130
    %v299 = vpop.f32.mrf.mxu0
    %v300 = vadd.f32 0.0, %v299
    %v301 = vpop.f32.mrf.mxu0
    %302 = vmatprep.mubr.f32.mxu0 0.0
    %303 = vmatmul.mubr.f32.gmra.mxu0 %v133
    %v304 = vpop.f32.mrf.mxu0
    %v305 = vadd.f32 0.0, %v304
    %v306 = vpop.f32.mrf.mxu0
    %307 = vmatprep.mubr.f32.mxu0 0.0
    %308 = vmatmul.mubr.f32.gmra.mxu0 %v136
    %v309 = vpop.f32.mrf.mxu0
    %v310 = vadd.f32 0.0, %v309
    %v311 = vpop.f32.mrf.mxu0
    %312 = vmatprep.mubr.f32.mxu0 0.0
    %313 = vmatmul.mubr.f32.gmra.mxu0 %v139
    %v314 = vpop.f32.mrf.mxu0
    %v315 = vadd.f32 0.0, %v314
    %v316 = vpop.f32.mrf.mxu0
    %317 = vmatprep.mubr.f32.mxu0 0.0
    %318 = vmatmul.mubr.f32.gmra.mxu0 %v142
    %v319 = vpop.f32.mrf.mxu0
    %v320 = vadd.f32 0.0, %v319
    %v321 = vpop.f32.mrf.mxu0
    %322 = vmatprep.mubr.f32.mxu0 0.0
    %323 = vmatmul.mubr.f32.gmra.mxu0 %v145
    %v324 = vpop.f32.mrf.mxu0
    %v325 = vadd.f32 0.0, %v324
    %v326 = vpop.f32.mrf.mxu0
    %327 = vmatprep.mubr.f32.mxu0 0.0
    %328 = vmatmul.mubr.f32.gmra.mxu0 %v148
    %v329 = vpop.f32.mrf.mxu0
    %v330 = vadd.f32 0.0, %v329
    %v331 = vpop.f32.mrf.mxu0
    %332 = vmatprep.mubr.f32.mxu0 0.0
    %333 = vmatmul.mubr.f32.gmra.mxu0 %v151
    %v334 = vpop.f32.mrf.mxu0
    %v335 = vadd.f32 0.0, %v334
    %v336 = vpop.f32.mrf.mxu0
    %337 = vmatprep.mubr.f32.mxu0 0.0
    %338 = vmatmul.mubr.f32.gmra.mxu0 %v154
    %v339 = vpop.f32.mrf.mxu0
    %v340 = vadd.f32 0.0, %v339
    %v341 = vpop.f32.mrf.mxu0
    %342 = vmatprep.mubr.f32.mxu0 0.0
    %343 = vmatmul.mubr.f32.gmra.mxu0 %v157
    %v344 = vpop.f32.mrf.mxu0
    %v345 = vadd.f32 0.0, %v344
    %v346 = vpop.f32.mrf.mxu0
    %347 = vmatprep.mubr.f32.mxu0 0.0
    %348 = vmatmul.mubr.f32.gmra.mxu0 %v160
    %v349 = vpop.f32.mrf.mxu0
    %v350 = vadd.f32 0.0, %v349
    %v351 = vpop.f32.mrf.mxu0
    %352 = vmatprep.mubr.f32.mxu0 0.0
    %353 = vmatmul.mubr.f32.gmra.mxu0 %v163
    %v354 = vpop.f32.mrf.mxu0
    %v355 = vadd.f32 0.0, %v354
    %v356 = vpop.f32.mrf.mxu0
    %357 = vmatprep.mubr.f32.mxu0 0.0
    %358 = vmatmul.mubr.f32.gmra.mxu0 %v166
    %v359 = vpop.f32.mrf.mxu0
    %v360 = vadd.f32 0.0, %v359
    %v361 = vpop.f32.mrf.mxu0
    %362 = vmatprep.mubr.f32.mxu0 0.0
    %363 = vmatmul.mubr.f32.gmra.mxu0 %v169
    %v364 = vpop.f32.mrf.mxu0
    %v365 = vadd.f32 0.0, %v364
    %v366 = vpop.f32.mrf.mxu0
    %367 = vmatprep.mubr.f32.mxu0 0.0
    %368 = vmatmul.mubr.f32.gmra.mxu0 %v172
    %v369 = vpop.f32.mrf.mxu0
    %v370 = vadd.f32 0.0, %v369
    %v371 = vpop.f32.mrf.mxu0
    %372 = vmatprep.mubr.f32.mxu0 0.0
    %373 = vmatmul.mubr.f32.gmra.mxu0 %v175
    %v374 = vpop.f32.mrf.mxu0
    %v375 = vadd.f32 0.0, %v374
    %v376 = vpop.f32.mrf.mxu0
    %377 = vmatprep.mubr.f32.mxu0 0.0
    %378 = vmatmul.mubr.f32.gmra.mxu0 %v178
    %v379 = vpop.f32.mrf.mxu0
    %v380 = vadd.f32 0.0, %v379
    %v381 = vpop.f32.mrf.mxu0
    %382 = vmatprep.mubr.f32.mxu0 0.0
    %383 = vmatmul.mubr.f32.gmra.mxu0 %v181
    %v384 = vpop.f32.mrf.mxu0
    %v385 = vadd.f32 0.0, %v384
    %v386 = vpop.f32.mrf.mxu0
    %387 = vmatprep.mubr.f32.mxu0 0.0
    %388 = vmatmul.mubr.f32.gmra.mxu0 %v184
    %v389 = vpop.f32.mrf.mxu0
    %v390 = vadd.f32 0.0, %v389
    %v391 = vpop.f32.mrf.mxu0
    %392 = vmatprep.mubr.f32.mxu0 0.0
    %393 = vmatmul.mubr.f32.gmra.mxu0 %v187
    %v394 = vpop.f32.mrf.mxu0
    %v395 = vadd.f32 0.0, %v394
    %v396 = vpop.f32.mrf.mxu0
    %397 = vmatprep.mubr.f32.mxu0 0.0
    %398 = vmatmul.mubr.f32.gmra.mxu0 %v190
    %v399 = vpop.f32.mrf.mxu0
    %v400 = vadd.f32 0.0, %v399
    %v401 = vpop.f32.mrf.mxu0
    %402 = vmatprep.mubr.f32.mxu0 0.0
    %403 = vmatmul.mubr.f32.gmra.mxu0 %v193
    %v404 = vpop.f32.mrf.mxu0
    %v405 = vadd.f32 0.0, %v404
    %v406 = vpop.f32.mrf.mxu0
    %407 = vmatprep.mubr.f32.mxu0 0.0
    %408 = vmatmul.mubr.f32.gmra.mxu0 %v196
    %v409 = vpop.f32.mrf.mxu0
    %v410 = vadd.f32 0.0, %v409
    %v411 = vpop.f32.mrf.mxu0
    %412 = vmatprep.mubr.f32.mxu0 0.0
    %413 = vmatmul.mubr.f32.gmra.mxu0 %v199
    %v414 = vpop.f32.mrf.mxu0
    %v415 = vadd.f32 0.0, %v414
    %v416 = vpop.f32.mrf.mxu0
    %417 = vmatprep.mubr.f32.mxu0 0.0
    %418 = vmatmul.mubr.f32.gmra.mxu0 %v202
    %v419 = vpop.f32.mrf.mxu0
    %v420 = vadd.f32 0.0, %v419
    %v421 = vpop.f32.mrf.mxu0
    %422 = vmatprep.mubr.f32.mxu0 0.0
    %423 = vmatmul.mubr.f32.gmra.mxu0 %v205
    %v424 = vpop.f32.mrf.mxu0
    %v425 = vadd.f32 0.0, %v424
    %v426 = vpop.f32.mrf.mxu0
    %427 = vmatprep.mubr.f32.mxu0 0.0
    %428 = vmatmul.mubr.f32.gmra.mxu0 %v208
    %v429 = vpop.f32.mrf.mxu0
    %v430 = vadd.f32 0.0, %v429
    %v431 = vpop.f32.mrf.mxu0
    %432 = vmatprep.mubr.f32.mxu0 0.0
    %433 = vmatmul.mubr.f32.gmra.mxu0 %v211
    %v434 = vpop.f32.mrf.mxu0
    %v435 = vadd.f32 0.0, %v434
    %v436 = vpop.f32.mrf.mxu0
    %437 = vdwg.mxu0
    %v438 = vadd.f32 %v48, %v280
    %v439 = vadd.f32 %v49, %v285
    %v440 = vadd.f32 %v50, %v290
    %v441 = vadd.f32 %v51, %v295
    %v442 = vadd.f32 %v52, %v300
    %v443 = vadd.f32 %v53, %v305
    %v444 = vadd.f32 %v54, %v310
    %v445 = vadd.f32 %v55, %v315
    %v446 = vadd.f32 %v56, %v320
    %v447 = vadd.f32 %v57, %v325
    %v448 = vadd.f32 %v58, %v330
    %v449 = vadd.f32 %v59, %v335
    %v450 = vadd.f32 %v60, %v340
    %v451 = vadd.f32 %v61, %v345
    %v452 = vadd.f32 %v62, %v350
    %v453 = vadd.f32 %v63, %v355
    %v454 = vadd.f32 %v64, %v360
    %v455 = vadd.f32 %v65, %v365
    %v456 = vadd.f32 %v66, %v370
    %v457 = vadd.f32 %v67, %v375
    %v458 = vadd.f32 %v68, %v380
    %v459 = vadd.f32 %v69, %v385
    %v460 = vadd.f32 %v70, %v390
    %v461 = vadd.f32 %v71, %v395
    %v462 = vadd.f32 %v72, %v400
    %v463 = vadd.f32 %v73, %v405
    %v464 = vadd.f32 %v74, %v410
    %v465 = vadd.f32 %v75, %v415
    %v466 = vadd.f32 %v76, %v420
    %v467 = vadd.f32 %v77, %v425
    %v468 = vadd.f32 %v78, %v430
    %v469 = vadd.f32 %v79, %v435
    %470 = vst [vmem:[#allocation2] sm:$0xff] %v438
    %471 = vst [vmem:[#allocation2 + $0x8] sm:$0xff] %v439
    %472 = vst [vmem:[#allocation2 + $0x10] sm:$0xff] %v440
    %473 = vst [vmem:[#allocation2 + $0x18] sm:$0xff] %v441
    %474 = vst [vmem:[#allocation2 + $0x20] sm:$0xff] %v442
    %475 = vst [vmem:[#allocation2 + $0x28] sm:$0xff] %v443
    %476 = vst [vmem:[#allocation2 + $0x30] sm:$0xff] %v444
    %477 = vst [vmem:[#allocation2 + $0x38] sm:$0xff] %v445
    %478 = vst [vmem:[#allocation2 + $0x40] sm:$0xff] %v446
    %479 = vst [vmem:[#allocation2 + $0x48] sm:$0xff] %v447
    %480 = vst [vmem:[#allocation2 + $0x50] sm:$0xff] %v448
    %481 = vst [vmem:[#allocation2 + $0x58] sm:$0xff] %v449
    %482 = vst [vmem:[#allocation2 + $0x60] sm:$0xff] %v450
    %483 = vst [vmem:[#allocation2 + $0x68] sm:$0xff] %v451
    %484 = vst [vmem:[#allocation2 + $0x70] sm:$0xff] %v452
    %485 = vst [vmem:[#allocation2 + $0x78] sm:$0xff] %v453
    %486 = vst [vmem:[#allocation2 + $0x80] sm:$0xff] %v454
    %487 = vst [vmem:[#allocation2 + $0x88] sm:$0xff] %v455
    %488 = vst [vmem:[#allocation2 + $0x90] sm:$0xff] %v456
    %489 = vst [vmem:[#allocation2 + $0x98] sm:$0xff] %v457
    %490 = vst [vmem:[#allocation2 + $0xa0] sm:$0xff] %v458
    %491 = vst [vmem:[#allocation2 + $0xa8] sm:$0xff] %v459
    %492 = vst [vmem:[#allocation2 + $0xb0] sm:$0xff] %v460
    %493 = vst [vmem:[#allocation2 + $0xb8] sm:$0xff] %v461
    %494 = vst [vmem:[#allocation2 + $0xc0] sm:$0xff] %v462
    %495 = vst [vmem:[#allocation2 + $0xc8] sm:$0xff] %v463
    %496 = vst [vmem:[#allocation2 + $0xd0] sm:$0xff] %v464
    %497 = vst [vmem:[#allocation2 + $0xd8] sm:$0xff] %v465
    %498 = vst [vmem:[#allocation2 + $0xe0] sm:$0xff] %v466
    %499 = vst [vmem:[#allocation2 + $0xe8] sm:$0xff] %v467
    %500 = vst [vmem:[#allocation2 + $0xf0] sm:$0xff] %v468
    %501 = vst [vmem:[#allocation2 + $0xf8] sm:$0xff] %v469
    // Predicated region
    $region14: #{tpu_custom_call.1} parent=1 // pred_check
      %p502 = pneg %p12
    $region15: #{tpu_custom_call.1} parent=1 // pred_check_branch
      %504 = sbr.rel (%p502) target = $region17
    $region16: #{tpu_custom_call.1} parent=1 // pred_region
      %v505 = vld [vmem:[#allocation2] sm:$0xff]
      %v506 = vld [vmem:[#allocation2 + $0x8] sm:$0xff]
      %v507 = vld [vmem:[#allocation2 + $0x10] sm:$0xff]
      %v508 = vld [vmem:[#allocation2 + $0x18] sm:$0xff]
      %v509 = vld [vmem:[#allocation2 + $0x20] sm:$0xff]
      %v510 = vld [vmem:[#allocation2 + $0x28] sm:$0xff]
      %v511 = vld [vmem:[#allocation2 + $0x30] sm:$0xff]
      %v512 = vld [vmem:[#allocation2 + $0x38] sm:$0xff]
      %v513 = vld [vmem:[#allocation2 + $0x40] sm:$0xff]
      %v514 = vld [vmem:[#allocation2 + $0x48] sm:$0xff]
      %v515 = vld [vmem:[#allocation2 + $0x50] sm:$0xff]
      %v516 = vld [vmem:[#allocation2 + $0x58] sm:$0xff]
      %v517 = vld [vmem:[#allocation2 + $0x60] sm:$0xff]
      %v518 = vld [vmem:[#allocation2 + $0x68] sm:$0xff]
      %v519 = vld [vmem:[#allocation2 + $0x70] sm:$0xff]
      %v520 = vld [vmem:[#allocation2 + $0x78] sm:$0xff]
      %v521 = vld [vmem:[#allocation2 + $0x80] sm:$0xff]
      %v522 = vld [vmem:[#allocation2 + $0x88] sm:$0xff]
      %v523 = vld [vmem:[#allocation2 + $0x90] sm:$0xff]
      %v524 = vld [vmem:[#allocation2 + $0x98] sm:$0xff]
      %v525 = vld [vmem:[#allocation2 + $0xa0] sm:$0xff]
      %v526 = vld [vmem:[#allocation2 + $0xa8] sm:$0xff]
      %v527 = vld [vmem:[#allocation2 + $0xb0] sm:$0xff]
      %v528 = vld [vmem:[#allocation2 + $0xb8] sm:$0xff]
      %v529 = vld [vmem:[#allocation2 + $0xc0] sm:$0xff]
      %v530 = vld [vmem:[#allocation2 + $0xc8] sm:$0xff]
      %v531 = vld [vmem:[#allocation2 + $0xd0] sm:$0xff]
      %v532 = vld [vmem:[#allocation2 + $0xd8] sm:$0xff]
      %v533 = vld [vmem:[#allocation2 + $0xe0] sm:$0xff]
      %v534 = vld [vmem:[#allocation2 + $0xe8] sm:$0xff]
      %v535 = vld [vmem:[#allocation2 + $0xf0] sm:$0xff]
      %v536 = vld [vmem:[#allocation2 + $0xf8] sm:$0xff]
      %537 = vst [vmem:[#allocation3] sm:$0xff] %v505
      %538 = vst [vmem:[#allocation3 + $0x8] sm:$0xff] %v506
      %539 = vst [vmem:[#allocation3 + $0x10] sm:$0xff] %v507
      %540 = vst [vmem:[#allocation3 + $0x18] sm:$0xff] %v508
      %541 = vst [vmem:[#allocation3 + $0x20] sm:$0xff] %v509
      %542 = vst [vmem:[#allocation3 + $0x28] sm:$0xff] %v510
      %543 = vst [vmem:[#allocation3 + $0x30] sm:$0xff] %v511
      %544 = vst [vmem:[#allocation3 + $0x38] sm:$0xff] %v512
      %545 = vst [vmem:[#allocation3 + $0x40] sm:$0xff] %v513
      %546 = vst [vmem:[#allocation3 + $0x48] sm:$0xff] %v514
      %547 = vst [vmem:[#allocation3 + $0x50] sm:$0xff] %v515
      %548 = vst [vmem:[#allocation3 + $0x58] sm:$0xff] %v516
      %549 = vst [vmem:[#allocation3 + $0x60] sm:$0xff] %v517
      %550 = vst [vmem:[#allocation3 + $0x68] sm:$0xff] %v518
      %551 = vst [vmem:[#allocation3 + $0x70] sm:$0xff] %v519
      %552 = vst [vmem:[#allocation3 + $0x78] sm:$0xff] %v520
      %553 = vst [vmem:[#allocation3 + $0x80] sm:$0xff] %v521
      %554 = vst [vmem:[#allocation3 + $0x88] sm:$0xff] %v522
      %555 = vst [vmem:[#allocation3 + $0x90] sm:$0xff] %v523
      %556 = vst [vmem:[#allocation3 + $0x98] sm:$0xff] %v524
      %557 = vst [vmem:[#allocation3 + $0xa0] sm:$0xff] %v525
      %558 = vst [vmem:[#allocation3 + $0xa8] sm:$0xff] %v526
      %559 = vst [vmem:[#allocation3 + $0xb0] sm:$0xff] %v527
      %560 = vst [vmem:[#allocation3 + $0xb8] sm:$0xff] %v528
      %561 = vst [vmem:[#allocation3 + $0xc0] sm:$0xff] %v529
      %562 = vst [vmem:[#allocation3 + $0xc8] sm:$0xff] %v530
      %563 = vst [vmem:[#allocation3 + $0xd0] sm:$0xff] %v531
      %564 = vst [vmem:[#allocation3 + $0xd8] sm:$0xff] %v532
      %565 = vst [vmem:[#allocation3 + $0xe0] sm:$0xff] %v533
      %566 = vst [vmem:[#allocation3 + $0xe8] sm:$0xff] %v534
      %567 = vst [vmem:[#allocation3 + $0xf0] sm:$0xff] %v535
      %568 = vst [vmem:[#allocation3 + $0xf8] sm:$0xff] %v536
    $region17: #{tpu_custom_call.1} parent=1 // pred_fallthru
      _
    // Predicated region
    $region18: #{tpu_custom_call.1} parent=1 // pred_check
      _
    $region19: #{tpu_custom_call.1} parent=1 // pred_check_branch
      %570 = sbr.rel (0) target = $region21
    $region20: #{tpu_custom_call.1} parent=1 // pred_region
      %s572 = ssub.s32 4096, 4096
      %573 = vsyncadd [#allocation4], %s572
      %s574 = sshll.u32 [#allocation3], 4
      %s575 = int_to_ptr.vmem [resolvable:$true] %s574
      %580 = dma.vmem_to_hbm [thread:$0]  %s575, 4096, %s2, [#allocation4], 128, 128, 8
    $region21: #{tpu_custom_call.1} parent=1 // pred_fallthru
      _
    // Predicated region
    $region22: #{tpu_custom_call.1} parent=1 // pred_check
      _
    $region23: #{tpu_custom_call.1} parent=1 // pred_check_branch
      %582 = sbr.rel (0) target = $region25
    $region24: #{tpu_custom_call.1} parent=1 // pred_region
      %583 = dma.done [#allocation4], 4096
    $region25: #{tpu_custom_call.1} parent=1 // pred_fallthru
      _
    %584 = vsyncpa [#allocation4], 1

</llo_original>
